<compile_context>
chip_gen: v7x
topology: tpu7x:2x2x1
jax: 0.10.0
libtpu: 0.0.40
codegen_flags: <defaults>
</compile_context>

<pallas_src>
import functools

import numpy as np
import jax
import jax.numpy as jnp
from jax.experimental import pallas as pl
from jax.experimental.pallas import tpu as pltpu


def _round_up(v, m):
    return (v + m - 1) // m * m


def _resblock_kernel(x_ref, w1_ref, b1_ref, w2_ref, b2_ref, m_ref, o_ref, *, ks, W):
    # x_ref : (Cp, Lb)          lane-dense activations; Lb = images_per_block * H*W
    # w1_ref: (Cp, ks*ks*Cp)    conv1 weights packed as a single (Cout, K) matrix
    # b1_ref: (Cp, 1)
    # w2_ref: (Cp, ks*ks*Cp)    conv2 weights
    # b2_ref: (Cp, 1)
    # m_ref : (ks*ks, Cp, Lb)   per-tap validity masks, pre-broadcast over channels
    # o_ref : (Cp, Lb)
    p = (ks - 1) // 2
    n_tap = ks * ks
    Lb = x_ref.shape[-1]

    x = x_ref[...].astype(jnp.float32)                         # (Cp, Lb)

    def conv(a, w, b):
        # a: (Cp, Lb) f32.  Returns  w @ im2col(a) + b  ->  (Cp, Lb) f32.
        taps = []
        for t in range(n_tap):
            dy = t // ks - p
            dx = t % ks - p
            s = dy * W + dx                                    # flat lane shift of tap
            # win[i] = a[i + s] (circular roll); wrapped-around / cross-image lanes
            # are exactly the out-of-image positions the mask zeroes.
            win = a if s == 0 else pltpu.roll(a, shift=(-s) % Lb, axis=1)
            taps.append(win * m_ref[t])                        # aligned vmul, no bcast
        # Sublane-dim concat of 8-row-aligned pieces -> register-level im2col, so each
        # conv is one K=9*Cp MXU matmul instead of 9 small pushes.
        # TODO(synk): when scaling Cp / H*W beyond this toy size, stage the im2col via
        # a VMEM scratch (or accumulate per-tap matmuls), tile the spatial axis, and
        # optionally cast the dot operands to bf16 on v6e/v7x.
        s_all = jnp.concatenate(taps, axis=0)                  # (ks*ks*Cp, Lb)
        return jnp.dot(w, s_all, preferred_element_type=jnp.float32) + b

    h = jnp.maximum(conv(x, w1_ref[...], b1_ref[...]), 0.0)    # conv1 + ReLU
    out = conv(h, w2_ref[...], b2_ref[...]) + x                # conv2 + residual
    o_ref[...] = jnp.maximum(out, 0.0).astype(o_ref.dtype)     # final ReLU


def resblock_pallas(x_nchw, w1_oihw, b1, w2_oihw, b2, *, batch_blocks=1):
    """ResBlock forward. x: (N, Cin, H, W); w1: (Cmid, Cin, ks, ks); w2: (Cin, Cmid, ks, ks).

    batch_blocks: number of (parallel) grid steps the batch is split into.
    Use 1 on single-TensorCore chips (v5e/v6e); 2 on v7x so each TensorCore
    gets half the batch while still folding its images into the lane axis.
    """
    N, Cin, H, W = x_nchw.shape
    Cmid, _, ks, _ = w1_oihw.shape
    assert N % batch_blocks == 0
    HW = H * W
    n_tap = ks * ks
    p = (ks - 1) // 2
    Cp = max(_round_up(Cin, 8), _round_up(Cmid, 8))   # aligned channel count
    ipb = N // batch_blocks                            # images per grid step
    Lb = ipb * HW                                      # lanes per grid step
    L = N * HW

    # Fold batch into the lane axis: (Cp, N*H*W), zero-padded channels.
    x_folded = jnp.transpose(x_nchw, (1, 0, 2, 3)).reshape(Cin, L)
    x_in = jnp.pad(x_folded, ((0, Cp - Cin), (0, 0)))

    # Pack each conv's weights into one (Cp, ks*ks*Cp) matrix (column = tap*Cp + in_ch).
    def pack_w(w_oihw, cout, cin):
        w = jnp.transpose(w_oihw, (0, 2, 3, 1))        # (cout, ks, ks, cin)
        w = jnp.pad(w, ((0, Cp - cout), (0, 0), (0, 0), (0, Cp - cin)))
        return w.reshape(Cp, n_tap * Cp)

    w1_mat = pack_w(w1_oihw, Cmid, Cin)
    w2_mat = pack_w(w2_oihw, Cin, Cmid)
    b1_col = jnp.pad(b1, (0, Cp - Cmid)).reshape(Cp, 1)
    b2_col = jnp.pad(b2, (0, Cp - Cin)).reshape(Cp, 1)

    # Per-tap validity masks over the flat lane axis of ONE block (ipb whole images),
    # pre-broadcast over channels so the in-kernel multiply is a plain aligned vmul.
    hh, ww = np.meshgrid(np.arange(H), np.arange(W), indexing="ij")
    base = np.zeros((n_tap, HW), np.float32)
    for ky in range(ks):
        for kx in range(ks):
            dy, dx = ky - p, kx - p
            ok = (hh + dy >= 0) & (hh + dy < H) & (ww + dx >= 0) & (ww + dx < W)
            base[ky * ks + kx] = ok.reshape(HW).astype(np.float32)
    masks_np = np.broadcast_to(np.tile(base, (1, ipb))[:, None, :], (n_tap, Cp, Lb))
    masks = jnp.asarray(np.ascontiguousarray(masks_np))

    kernel = functools.partial(_resblock_kernel, ks=ks, W=W)

    out = pl.pallas_call(
        kernel,
        out_shape=jax.ShapeDtypeStruct((Cp, L), x_nchw.dtype),
        grid_spec=pltpu.PrefetchScalarGridSpec(
            num_scalar_prefetch=0,
            grid=(batch_blocks,),
            in_specs=[
                pl.BlockSpec((Cp, Lb), lambda i: (0, i)),
                pl.BlockSpec((Cp, n_tap * Cp), lambda i: (0, 0)),
                pl.BlockSpec((Cp, 1), lambda i: (0, 0)),
                pl.BlockSpec((Cp, n_tap * Cp), lambda i: (0, 0)),
                pl.BlockSpec((Cp, 1), lambda i: (0, 0)),
                pl.BlockSpec((n_tap, Cp, Lb), lambda i: (0, 0, 0)),
            ],
            out_specs=pl.BlockSpec((Cp, Lb), lambda i: (0, i)),
        ),
        compiler_params=pltpu.CompilerParams(
            dimension_semantics=("parallel",)),
    )(x_in, w1_mat, b1_col, w2_mat, b2_col, masks)

    # Unfold: (Cp, N*HW) -> (N, Cin, H, W); padded channels are dropped.
    return jnp.transpose(out[:Cin].reshape(Cin, N, H, W), (1, 0, 2, 3))


def resblock_reference(x_nchw, w1_oihw, b1, w2_oihw, b2):
    """Pure-JAX reference with PyTorch NCHW/OIHW semantics."""
    dn = ("NCHW", "OIHW", "NCHW")
    out = jax.lax.conv_general_dilated(
        x_nchw, w1_oihw, window_strides=(1, 1), padding="SAME",
        dimension_numbers=dn) + b1[None, :, None, None]
    out = jnp.maximum(out, 0.0)
    out = jax.lax.conv_general_dilated(
        out, w2_oihw, window_strides=(1, 1), padding="SAME",
        dimension_numbers=dn) + b2[None, :, None, None]
    out = out + x_nchw
    return jnp.maximum(out, 0.0)


if __name__ == "__main__":
    # Module config: inplanes=4, planes=8, ks=3.  Input (PyTorch NCHW): (2, 4, 16, 16).
    N, Cin, H, W = 2, 4, 16, 16
    Cmid, ks = 8, 3

    key = jax.random.PRNGKey(0)
    k_x, k_w1, k_b1, k_w2, k_b2 = jax.random.split(key, 5)

    x = jax.random.normal(k_x, (N, Cin, H, W), dtype=jnp.float32)
    w1 = 0.1 * jax.random.normal(k_w1, (Cmid, Cin, ks, ks), dtype=jnp.float32)
    b1 = 0.1 * jax.random.normal(k_b1, (Cmid,), dtype=jnp.float32)
    w2 = 0.1 * jax.random.normal(k_w2, (Cin, Cmid, ks, ks), dtype=jnp.float32)
    b2 = 0.1 * jax.random.normal(k_b2, (Cin,), dtype=jnp.float32)

    out = resblock_pallas(x, w1, b1, w2, b2)   # batch fully folded: one grid step
    out = jax.block_until_ready(out)

    ref = resblock_reference(x, w1, b1, w2, b2)
    assert out.shape == (N, Cin, H, W)
    max_err = float(jnp.max(jnp.abs(out - ref)))
    assert jnp.allclose(out, ref, atol=1e-4, rtol=1e-4), max_err

    print("KERNEL_OK")
</pallas_src>

<mosaic_0001>
module attributes {stable_mosaic.version = 11 : i64} {
  func.func @_resblock_kernel(%arg0: i32, %arg1: memref<8x512xf32, #tpu.memory_space<vmem>>, %arg2: memref<8x72xf32, #tpu.memory_space<vmem>>, %arg3: memref<8x1xf32, #tpu.memory_space<vmem>>, %arg4: memref<8x72xf32, #tpu.memory_space<vmem>>, %arg5: memref<8x1xf32, #tpu.memory_space<vmem>>, %arg6: memref<9x8x512xf32, #tpu.memory_space<vmem>>, %arg7: memref<8x512xf32, #tpu.memory_space<vmem>>) attributes {dimension_semantics = [#tpu.dimension_semantics<parallel>], iteration_bounds = array<i64: 1>, scalar_prefetch = 0 : i64, scratch_operands = 0 : i64, tpu.core_type = #tpu.core_type<tc>, window_params = [{transform_indices = @transform_0, window_bounds = array<i64: 8, 512>}, {pipeline_mode = #tpu.pipeline_mode<synchronous>, transform_indices = @transform_1, window_bounds = array<i64: 8, 72>}, {pipeline_mode = #tpu.pipeline_mode<synchronous>, transform_indices = @transform_2, window_bounds = array<i64: 8, 1>}, {pipeline_mode = #tpu.pipeline_mode<synchronous>, transform_indices = @transform_3, window_bounds = array<i64: 8, 72>}, {pipeline_mode = #tpu.pipeline_mode<synchronous>, transform_indices = @transform_4, window_bounds = array<i64: 8, 1>}, {pipeline_mode = #tpu.pipeline_mode<synchronous>, transform_indices = @transform_5, window_bounds = array<i64: 9, 8, 512>}, {transform_indices = @transform_6, window_bounds = array<i64: 8, 512>}]} {
    %c0 = arith.constant 0 : index
    %c0_0 = arith.constant 0 : index
    %0 = vector.load %arg1[%c0, %c0_0] : memref<8x512xf32, #tpu.memory_space<vmem>>, vector<8x512xf32>
    %c0_1 = arith.constant 0 : index
    %c0_2 = arith.constant 0 : index
    %1 = vector.load %arg2[%c0_1, %c0_2] : memref<8x72xf32, #tpu.memory_space<vmem>>, vector<8x72xf32>
    %c0_3 = arith.constant 0 : index
    %c0_4 = arith.constant 0 : index
    %2 = vector.load %arg3[%c0_3, %c0_4] : memref<8x1xf32, #tpu.memory_space<vmem>>, vector<8x1xf32>
    %c17_i32 = arith.constant 17 : i32
    %3 = tpu.dynamic_rotate %0 by %c17_i32 dim 1 : vector<8x512xf32>, i32 -> vector<8x512xf32>
    %c0_5 = arith.constant 0 : index
    %c0_6 = arith.constant 0 : index
    %c0_7 = arith.constant 0 : index
    %4 = vector.load %arg6[%c0_5, %c0_6, %c0_7] : memref<9x8x512xf32, #tpu.memory_space<vmem>>, vector<1x8x512xf32>
    %5 = vector.shape_cast %4 : vector<1x8x512xf32> to vector<8x512xf32>
    %6 = arith.mulf %3, %5 : vector<8x512xf32>
    %c16_i32 = arith.constant 16 : i32
    %7 = tpu.dynamic_rotate %0 by %c16_i32 dim 1 : vector<8x512xf32>, i32 -> vector<8x512xf32>
    %c1 = arith.constant 1 : index
    %c0_8 = arith.constant 0 : index
    %c0_9 = arith.constant 0 : index
    %8 = vector.load %arg6[%c1, %c0_8, %c0_9] : memref<9x8x512xf32, #tpu.memory_space<vmem>>, vector<1x8x512xf32>
    %9 = vector.shape_cast %8 : vector<1x8x512xf32> to vector<8x512xf32>
    %10 = arith.mulf %7, %9 : vector<8x512xf32>
    %c15_i32 = arith.constant 15 : i32
    %11 = tpu.dynamic_rotate %0 by %c15_i32 dim 1 : vector<8x512xf32>, i32 -> vector<8x512xf32>
    %c2 = arith.constant 2 : index
    %c0_10 = arith.constant 0 : index
    %c0_11 = arith.constant 0 : index
    %12 = vector.load %arg6[%c2, %c0_10, %c0_11] : memref<9x8x512xf32, #tpu.memory_space<vmem>>, vector<1x8x512xf32>
    %13 = vector.shape_cast %12 : vector<1x8x512xf32> to vector<8x512xf32>
    %14 = arith.mulf %11, %13 : vector<8x512xf32>
    %c1_i32 = arith.constant 1 : i32
    %15 = tpu.dynamic_rotate %0 by %c1_i32 dim 1 : vector<8x512xf32>, i32 -> vector<8x512xf32>
    %c3 = arith.constant 3 : index
    %c0_12 = arith.constant 0 : index
    %c0_13 = arith.constant 0 : index
    %16 = vector.load %arg6[%c3, %c0_12, %c0_13] : memref<9x8x512xf32, #tpu.memory_space<vmem>>, vector<1x8x512xf32>
    %17 = vector.shape_cast %16 : vector<1x8x512xf32> to vector<8x512xf32>
    %18 = arith.mulf %15, %17 : vector<8x512xf32>
    %c4 = arith.constant 4 : index
    %c0_14 = arith.constant 0 : index
    %c0_15 = arith.constant 0 : index
    %19 = vector.load %arg6[%c4, %c0_14, %c0_15] : memref<9x8x512xf32, #tpu.memory_space<vmem>>, vector<1x8x512xf32>
    %20 = vector.shape_cast %19 : vector<1x8x512xf32> to vector<8x512xf32>
    %21 = arith.mulf %0, %20 : vector<8x512xf32>
    %c511_i32 = arith.constant 511 : i32
    %22 = tpu.dynamic_rotate %0 by %c511_i32 dim 1 : vector<8x512xf32>, i32 -> vector<8x512xf32>
    %c5 = arith.constant 5 : index
    %c0_16 = arith.constant 0 : index
    %c0_17 = arith.constant 0 : index
    %23 = vector.load %arg6[%c5, %c0_16, %c0_17] : memref<9x8x512xf32, #tpu.memory_space<vmem>>, vector<1x8x512xf32>
    %24 = vector.shape_cast %23 : vector<1x8x512xf32> to vector<8x512xf32>
    %25 = arith.mulf %22, %24 : vector<8x512xf32>
    %c497_i32 = arith.constant 497 : i32
    %26 = tpu.dynamic_rotate %0 by %c497_i32 dim 1 : vector<8x512xf32>, i32 -> vector<8x512xf32>
    %c6 = arith.constant 6 : index
    %c0_18 = arith.constant 0 : index
    %c0_19 = arith.constant 0 : index
    %27 = vector.load %arg6[%c6, %c0_18, %c0_19] : memref<9x8x512xf32, #tpu.memory_space<vmem>>, vector<1x8x512xf32>
    %28 = vector.shape_cast %27 : vector<1x8x512xf32> to vector<8x512xf32>
    %29 = arith.mulf %26, %28 : vector<8x512xf32>
    %c496_i32 = arith.constant 496 : i32
    %30 = tpu.dynamic_rotate %0 by %c496_i32 dim 1 : vector<8x512xf32>, i32 -> vector<8x512xf32>
    %c7 = arith.constant 7 : index
    %c0_20 = arith.constant 0 : index
    %c0_21 = arith.constant 0 : index
    %31 = vector.load %arg6[%c7, %c0_20, %c0_21] : memref<9x8x512xf32, #tpu.memory_space<vmem>>, vector<1x8x512xf32>
    %32 = vector.shape_cast %31 : vector<1x8x512xf32> to vector<8x512xf32>
    %33 = arith.mulf %30, %32 : vector<8x512xf32>
    %c495_i32 = arith.constant 495 : i32
    %34 = tpu.dynamic_rotate %0 by %c495_i32 dim 1 : vector<8x512xf32>, i32 -> vector<8x512xf32>
    %c8 = arith.constant 8 : index
    %c0_22 = arith.constant 0 : index
    %c0_23 = arith.constant 0 : index
    %35 = vector.load %arg6[%c8, %c0_22, %c0_23] : memref<9x8x512xf32, #tpu.memory_space<vmem>>, vector<1x8x512xf32>
    %36 = vector.shape_cast %35 : vector<1x8x512xf32> to vector<8x512xf32>
    %37 = arith.mulf %34, %36 : vector<8x512xf32>
    %38 = tpu.concatenate %6, %10, %14, %18, %21, %25, %29, %33, %37 in 0 : vector<8x512xf32>, vector<8x512xf32>, vector<8x512xf32>, vector<8x512xf32>, vector<8x512xf32>, vector<8x512xf32>, vector<8x512xf32>, vector<8x512xf32>, vector<8x512xf32> -> vector<72x512xf32>
    %cst = arith.constant dense<0.000000e+00> : vector<8x512xf32>
    %39 = tpu.matmul %1, %38, %cst {dimension_numbers = #tpu.dot_dimension_numbers<[1], [0], [0], [1], [0, 0, 1, 1], [], []>} : vector<8x72xf32>, vector<72x512xf32>, vector<8x512xf32> -> vector<8x512xf32>
    %40 = vector.broadcast %2 : vector<8x1xf32> to vector<8x512xf32>
    %41 = arith.addf %39, %40 : vector<8x512xf32>
    %cst_24 = arith.constant 0.000000e+00 : f32
    %42 = vector.broadcast %cst_24 : f32 to vector<8x512xf32>
    %43 = arith.maximumf %41, %42 : vector<8x512xf32>
    %c0_25 = arith.constant 0 : index
    %c0_26 = arith.constant 0 : index
    %44 = vector.load %arg4[%c0_25, %c0_26] : memref<8x72xf32, #tpu.memory_space<vmem>>, vector<8x72xf32>
    %c0_27 = arith.constant 0 : index
    %c0_28 = arith.constant 0 : index
    %45 = vector.load %arg5[%c0_27, %c0_28] : memref<8x1xf32, #tpu.memory_space<vmem>>, vector<8x1xf32>
    %c17_i32_29 = arith.constant 17 : i32
    %46 = tpu.dynamic_rotate %43 by %c17_i32_29 dim 1 : vector<8x512xf32>, i32 -> vector<8x512xf32>
    %c0_30 = arith.constant 0 : index
    %c0_31 = arith.constant 0 : index
    %c0_32 = arith.constant 0 : index
    %47 = vector.load %arg6[%c0_30, %c0_31, %c0_32] : memref<9x8x512xf32, #tpu.memory_space<vmem>>, vector<1x8x512xf32>
    %48 = vector.shape_cast %47 : vector<1x8x512xf32> to vector<8x512xf32>
    %49 = arith.mulf %46, %48 : vector<8x512xf32>
    %c16_i32_33 = arith.constant 16 : i32
    %50 = tpu.dynamic_rotate %43 by %c16_i32_33 dim 1 : vector<8x512xf32>, i32 -> vector<8x512xf32>
    %c1_34 = arith.constant 1 : index
    %c0_35 = arith.constant 0 : index
    %c0_36 = arith.constant 0 : index
    %51 = vector.load %arg6[%c1_34, %c0_35, %c0_36] : memref<9x8x512xf32, #tpu.memory_space<vmem>>, vector<1x8x512xf32>
    %52 = vector.shape_cast %51 : vector<1x8x512xf32> to vector<8x512xf32>
    %53 = arith.mulf %50, %52 : vector<8x512xf32>
    %c15_i32_37 = arith.constant 15 : i32
    %54 = tpu.dynamic_rotate %43 by %c15_i32_37 dim 1 : vector<8x512xf32>, i32 -> vector<8x512xf32>
    %c2_38 = arith.constant 2 : index
    %c0_39 = arith.constant 0 : index
    %c0_40 = arith.constant 0 : index
    %55 = vector.load %arg6[%c2_38, %c0_39, %c0_40] : memref<9x8x512xf32, #tpu.memory_space<vmem>>, vector<1x8x512xf32>
    %56 = vector.shape_cast %55 : vector<1x8x512xf32> to vector<8x512xf32>
    %57 = arith.mulf %54, %56 : vector<8x512xf32>
    %c1_i32_41 = arith.constant 1 : i32
    %58 = tpu.dynamic_rotate %43 by %c1_i32_41 dim 1 : vector<8x512xf32>, i32 -> vector<8x512xf32>
    %c3_42 = arith.constant 3 : index
    %c0_43 = arith.constant 0 : index
    %c0_44 = arith.constant 0 : index
    %59 = vector.load %arg6[%c3_42, %c0_43, %c0_44] : memref<9x8x512xf32, #tpu.memory_space<vmem>>, vector<1x8x512xf32>
    %60 = vector.shape_cast %59 : vector<1x8x512xf32> to vector<8x512xf32>
    %61 = arith.mulf %58, %60 : vector<8x512xf32>
    %c4_45 = arith.constant 4 : index
    %c0_46 = arith.constant 0 : index
    %c0_47 = arith.constant 0 : index
    %62 = vector.load %arg6[%c4_45, %c0_46, %c0_47] : memref<9x8x512xf32, #tpu.memory_space<vmem>>, vector<1x8x512xf32>
    %63 = vector.shape_cast %62 : vector<1x8x512xf32> to vector<8x512xf32>
    %64 = arith.mulf %43, %63 : vector<8x512xf32>
    %c511_i32_48 = arith.constant 511 : i32
    %65 = tpu.dynamic_rotate %43 by %c511_i32_48 dim 1 : vector<8x512xf32>, i32 -> vector<8x512xf32>
    %c5_49 = arith.constant 5 : index
    %c0_50 = arith.constant 0 : index
    %c0_51 = arith.constant 0 : index
    %66 = vector.load %arg6[%c5_49, %c0_50, %c0_51] : memref<9x8x512xf32, #tpu.memory_space<vmem>>, vector<1x8x512xf32>
    %67 = vector.shape_cast %66 : vector<1x8x512xf32> to vector<8x512xf32>
    %68 = arith.mulf %65, %67 : vector<8x512xf32>
    %c497_i32_52 = arith.constant 497 : i32
    %69 = tpu.dynamic_rotate %43 by %c497_i32_52 dim 1 : vector<8x512xf32>, i32 -> vector<8x512xf32>
    %c6_53 = arith.constant 6 : index
    %c0_54 = arith.constant 0 : index
    %c0_55 = arith.constant 0 : index
    %70 = vector.load %arg6[%c6_53, %c0_54, %c0_55] : memref<9x8x512xf32, #tpu.memory_space<vmem>>, vector<1x8x512xf32>
    %71 = vector.shape_cast %70 : vector<1x8x512xf32> to vector<8x512xf32>
    %72 = arith.mulf %69, %71 : vector<8x512xf32>
    %c496_i32_56 = arith.constant 496 : i32
    %73 = tpu.dynamic_rotate %43 by %c496_i32_56 dim 1 : vector<8x512xf32>, i32 -> vector<8x512xf32>
    %c7_57 = arith.constant 7 : index
    %c0_58 = arith.constant 0 : index
    %c0_59 = arith.constant 0 : index
    %74 = vector.load %arg6[%c7_57, %c0_58, %c0_59] : memref<9x8x512xf32, #tpu.memory_space<vmem>>, vector<1x8x512xf32>
    %75 = vector.shape_cast %74 : vector<1x8x512xf32> to vector<8x512xf32>
    %76 = arith.mulf %73, %75 : vector<8x512xf32>
    %c495_i32_60 = arith.constant 495 : i32
    %77 = tpu.dynamic_rotate %43 by %c495_i32_60 dim 1 : vector<8x512xf32>, i32 -> vector<8x512xf32>
    %c8_61 = arith.constant 8 : index
    %c0_62 = arith.constant 0 : index
    %c0_63 = arith.constant 0 : index
    %78 = vector.load %arg6[%c8_61, %c0_62, %c0_63] : memref<9x8x512xf32, #tpu.memory_space<vmem>>, vector<1x8x512xf32>
    %79 = vector.shape_cast %78 : vector<1x8x512xf32> to vector<8x512xf32>
    %80 = arith.mulf %77, %79 : vector<8x512xf32>
    %81 = tpu.concatenate %49, %53, %57, %61, %64, %68, %72, %76, %80 in 0 : vector<8x512xf32>, vector<8x512xf32>, vector<8x512xf32>, vector<8x512xf32>, vector<8x512xf32>, vector<8x512xf32>, vector<8x512xf32>, vector<8x512xf32>, vector<8x512xf32> -> vector<72x512xf32>
    %cst_64 = arith.constant dense<0.000000e+00> : vector<8x512xf32>
    %82 = tpu.matmul %44, %81, %cst_64 {dimension_numbers = #tpu.dot_dimension_numbers<[1], [0], [0], [1], [0, 0, 1, 1], [], []>} : vector<8x72xf32>, vector<72x512xf32>, vector<8x512xf32> -> vector<8x512xf32>
    %83 = vector.broadcast %45 : vector<8x1xf32> to vector<8x512xf32>
    %84 = arith.addf %82, %83 : vector<8x512xf32>
    %85 = arith.addf %84, %0 : vector<8x512xf32>
    %cst_65 = arith.constant 0.000000e+00 : f32
    %86 = vector.broadcast %cst_65 : f32 to vector<8x512xf32>
    %87 = arith.maximumf %85, %86 : vector<8x512xf32>
    %c0_66 = arith.constant 0 : index
    %c0_67 = arith.constant 0 : index
    %88 = vector.load %arg7[%c0_66, %c0_67] : memref<8x512xf32, #tpu.memory_space<vmem>>, vector<8x512xf32>
    tpu.vector_store %arg7[%c0_66, %c0_67], %87 {strides = array<i32>} : memref<8x512xf32, #tpu.memory_space<vmem>>, vector<8x512xf32>,
    return
  }
  func.func @transform_0(%arg0: i32) -> (i32, i32) {
    %c0_i32 = arith.constant 0 : i32
    %c0_i32_0 = arith.constant 0 : i32
    return %c0_i32, %arg0 : i32, i32
  }
  func.func @transform_1(%arg0: i32) -> (i32, i32) {
    %c0_i32 = arith.constant 0 : i32
    %c0_i32_0 = arith.constant 0 : i32
    %c0_i32_1 = arith.constant 0 : i32
    return %c0_i32, %c0_i32_0 : i32, i32
  }
  func.func @transform_2(%arg0: i32) -> (i32, i32) {
    %c0_i32 = arith.constant 0 : i32
    %c0_i32_0 = arith.constant 0 : i32
    %c0_i32_1 = arith.constant 0 : i32
    return %c0_i32, %c0_i32_0 : i32, i32
  }
  func.func @transform_3(%arg0: i32) -> (i32, i32) {
    %c0_i32 = arith.constant 0 : i32
    %c0_i32_0 = arith.constant 0 : i32
    %c0_i32_1 = arith.constant 0 : i32
    return %c0_i32, %c0_i32_0 : i32, i32
  }
  func.func @transform_4(%arg0: i32) -> (i32, i32) {
    %c0_i32 = arith.constant 0 : i32
    %c0_i32_0 = arith.constant 0 : i32
    %c0_i32_1 = arith.constant 0 : i32
    return %c0_i32, %c0_i32_0 : i32, i32
  }
  func.func @transform_5(%arg0: i32) -> (i32, i32, i32) {
    %c0_i32 = arith.constant 0 : i32
    %c0_i32_0 = arith.constant 0 : i32
    %c0_i32_1 = arith.constant 0 : i32
    %c0_i32_2 = arith.constant 0 : i32
    return %c0_i32, %c0_i32_0, %c0_i32_1 : i32, i32, i32
  }
  func.func @transform_6(%arg0: i32) -> (i32, i32) {
    %c0_i32 = arith.constant 0 : i32
    %c0_i32_0 = arith.constant 0 : i32
    return %c0_i32, %arg0 : i32, i32
  }
}

</mosaic_0001>

<llo_original>
// kernel: tpu_custom_call.1
$region0: #{tpu_custom_call.1}
  #allocation0 [shape = 'u32[]', space=smem, size = 0x4, offset = 0x4, fixed_abs, tag = 'smem constant byte address 0x4 - core index']
  #allocation1 [shape = 'u32[144,128]{1,0:T(1,128)}', space=vmem, size = 0x12000, scoped, tag = 'internal scratch']
  %s0 = inlined_call_operand.hbm [shape: f32[8,512], index: 0, kind: input, shape index: {}]
  %s1 = inlined_call_operand.vmem [shape: f32[8,72], index: 1, kind: input, shape index: {}]
  %s2 = inlined_call_operand.vmem [shape: f32[8,1], index: 2, kind: input, shape index: {}]
  %s3 = inlined_call_operand.vmem [shape: f32[8,72], index: 3, kind: input, shape index: {}]
  %s4 = inlined_call_operand.vmem [shape: f32[8,1], index: 4, kind: input, shape index: {}]
  %s5 = inlined_call_operand.hbm [shape: f32[9,8,512], index: 5, kind: input, shape index: {}]
  %s6 = inlined_call_operand.hbm [shape: f32[8,512], index: 6, kind: output, shape index: {}]
  %s7 = sld [smem:[#allocation0]]
  $region42: #{tpu_custom_call.1} parent=0
    _
  %s9 = ssub.s32 1, %s7
  %s10 = scalar_select 0, %s9, %s7
  $region1: #{tpu_custom_call.1} parent=0
    #allocation2 [shape = 'u8[16384]{0}', space=vmem, size = 0x4000, scoped, tag = 'input window, operand 0, single buffered']
    #allocation3 [shape = 's32[1]{0}', space=sflag, size = 0x4, scoped, tag = 'scoped memory for tpu_custom_call.1']
    #allocation4 [shape = 's32[1]{0}', space=sflag, size = 0x4, scoped, tag = 'scoped memory for tpu_custom_call.1']
    #allocation5 [shape = 'u8[147456]{0}', space=vmem, size = 0x24000, scoped, tag = 'input window, operand 5, single buffered']
    #allocation6 [shape = 's32[1]{0}', space=sflag, size = 0x4, scoped, tag = 'scoped memory for tpu_custom_call.1']
    #allocation7 [shape = 'u8[16384]{0}', space=vmem, size = 0x4000, scoped, tag = 'output window, operand 0, single buffered']
    %11 = vsyncpa [#allocation3], 0
    %12 = vsyncpa [#allocation6], 0
    %13 = vsyncpa [#allocation4], 0
    // Predicated region
    $region2: #{tpu_custom_call.1} parent=1 // pred_check
      _
    $region3: #{tpu_custom_call.1} parent=1 // pred_check_branch
      %15 = sbr.rel (0) target = $region5
    $region4: #{tpu_custom_call.1} parent=1 // pred_region
      %s17 = ssub.s32 512, 512
      %18 = vsyncadd [#allocation3], %s17
      %s20 = sshll.u32 [#allocation2], 4
      %s21 = int_to_ptr.vmem [resolvable:$true] %s20
      %23 = dma.hbm_to_vmem [thread:$0]  %s0, 512, %s21, [#allocation3]
    $region5: #{tpu_custom_call.1} parent=1 // pred_fallthru
      _
    // Predicated region
    $region6: #{tpu_custom_call.1} parent=1 // pred_check
      _
    $region7: #{tpu_custom_call.1} parent=1 // pred_check_branch
      %25 = sbr.rel (0) target = $region9
    $region8: #{tpu_custom_call.1} parent=1 // pred_region
      _
    $region9: #{tpu_custom_call.1} parent=1 // pred_fallthru
      _
    // Predicated region
    $region10: #{tpu_custom_call.1} parent=1 // pred_check
      _
    $region11: #{tpu_custom_call.1} parent=1 // pred_check_branch
      %27 = sbr.rel (0) target = $region13
    $region12: #{tpu_custom_call.1} parent=1 // pred_region
      _
    $region13: #{tpu_custom_call.1} parent=1 // pred_fallthru
      _
    // Predicated region
    $region14: #{tpu_custom_call.1} parent=1 // pred_check
      _
    $region15: #{tpu_custom_call.1} parent=1 // pred_check_branch
      %29 = sbr.rel (0) target = $region17
    $region16: #{tpu_custom_call.1} parent=1 // pred_region
      _
    $region17: #{tpu_custom_call.1} parent=1 // pred_fallthru
      _
    // Predicated region
    $region18: #{tpu_custom_call.1} parent=1 // pred_check
      _
    $region19: #{tpu_custom_call.1} parent=1 // pred_check_branch
      %31 = sbr.rel (0) target = $region21
    $region20: #{tpu_custom_call.1} parent=1 // pred_region
      _
    $region21: #{tpu_custom_call.1} parent=1 // pred_fallthru
      _
    // Predicated region
    $region22: #{tpu_custom_call.1} parent=1 // pred_check
      _
    $region23: #{tpu_custom_call.1} parent=1 // pred_check_branch
      %33 = sbr.rel (0) target = $region25
    $region24: #{tpu_custom_call.1} parent=1 // pred_region
      %s35 = ssub.s32 4608, 4608
      %36 = vsyncadd [#allocation6], %s35
      %s37 = sshll.u32 [#allocation5], 4
      %s38 = int_to_ptr.vmem [resolvable:$true] %s37
      %43 = dma.hbm_to_vmem [thread:$0]  %s5, 4608, %s38, [#allocation6], 512, 512, 32
    $region25: #{tpu_custom_call.1} parent=1 // pred_fallthru
      _
    // Predicated region
    $region26: #{tpu_custom_call.1} parent=1 // pred_check
      _
    $region27: #{tpu_custom_call.1} parent=1 // pred_check_branch
      %45 = sbr.rel (0) target = $region29
    $region28: #{tpu_custom_call.1} parent=1 // pred_region
      %46 = dma.done [#allocation3], 512
    $region29: #{tpu_custom_call.1} parent=1 // pred_fallthru
      _
    // Predicated region
    $region30: #{tpu_custom_call.1} parent=1 // pred_check
      _
    $region31: #{tpu_custom_call.1} parent=1 // pred_check_branch
      %48 = sbr.rel (0) target = $region33
    $region32: #{tpu_custom_call.1} parent=1 // pred_region
      %49 = dma.done [#allocation6], 4608
    $region33: #{tpu_custom_call.1} parent=1 // pred_fallthru
      _
    %v50 = vld [vmem:[#allocation2] sm:$0xff]
    %v51 = vld [vmem:[#allocation2 + $0x8] sm:$0xff]
    %v52 = vld [vmem:[#allocation2 + $0x10] sm:$0xff]
    %v53 = vld [vmem:[#allocation2 + $0x18] sm:$0xff]
    %v54 = vld [vmem:[%s1] sm:$0xff]
    %v55 = vld [vmem:[%s2] sm:$0xff]
    %56 = vrot.lane.b32.xlu0 %v50, 17
    %v57 = vpop.permute.xlu0 %56
    %58 = vrot.lane.b32.xlu0 %v51, 17
    %v59 = vpop.permute.xlu0 %58
    %60 = vrot.lane.b32.xlu0 %v52, 17
    %v61 = vpop.permute.xlu0 %60
    %62 = vrot.lane.b32.xlu0 %v53, 17
    %v63 = vpop.permute.xlu0 %62
    %v64 = vlaneseq
    %v65 = vand.u32 %v64, 127
    %vm66 = vcmp.lt.s32.totalorder %v65, 17
    %v67 = vsel %vm66, %v61, %v63
    %v68 = vsel %vm66, %v59, %v61
    %v69 = vsel %vm66, %v57, %v59
    %v70 = vsel %vm66, %v63, %v57
    %v71 = vld [vmem:[#allocation5] sm:$0xff]
    %v72 = vld [vmem:[#allocation5 + $0x8] sm:$0xff]
    %v73 = vld [vmem:[#allocation5 + $0x10] sm:$0xff]
    %v74 = vld [vmem:[#allocation5 + $0x18] sm:$0xff]
    %v75 = vmul.f32 %v70, %v71
    %v76 = vmul.f32 %v69, %v72
    %v77 = vmul.f32 %v68, %v73
    %v78 = vmul.f32 %v67, %v74
    %79 = vrot.lane.b32.xlu0 %v50, 16
    %v80 = vpop.permute.xlu0 %79
    %81 = vrot.lane.b32.xlu0 %v51, 16
    %v82 = vpop.permute.xlu0 %81
    %83 = vrot.lane.b32.xlu0 %v52, 16
    %v84 = vpop.permute.xlu0 %83
    %85 = vrot.lane.b32.xlu0 %v53, 16
    %v86 = vpop.permute.xlu0 %85
    %vm87 = vcmp.lt.s32.totalorder %v65, 16
    %v88 = vsel %vm87, %v84, %v86
    %v89 = vsel %vm87, %v82, %v84
    %v90 = vsel %vm87, %v80, %v82
    %v91 = vsel %vm87, %v86, %v80
    %s92 = scalar_lea.vmem [#allocation5], 32
    %v93 = vld [vmem:[%s92] sm:$0xff]
    %v94 = vld [vmem:[%s92 + $0x8] sm:$0xff]
    %v95 = vld [vmem:[%s92 + $0x10] sm:$0xff]
    %v96 = vld [vmem:[%s92 + $0x18] sm:$0xff]
    %v97 = vmul.f32 %v91, %v93
    %v98 = vmul.f32 %v90, %v94
    %v99 = vmul.f32 %v89, %v95
    %v100 = vmul.f32 %v88, %v96
    %101 = vrot.lane.b32.xlu0 %v50, 15
    %v102 = vpop.permute.xlu0 %101
    %103 = vrot.lane.b32.xlu0 %v51, 15
    %v104 = vpop.permute.xlu0 %103
    %105 = vrot.lane.b32.xlu0 %v52, 15
    %v106 = vpop.permute.xlu0 %105
    %107 = vrot.lane.b32.xlu0 %v53, 15
    %v108 = vpop.permute.xlu0 %107
    %vm109 = vcmp.lt.s32.totalorder %v65, 15
    %v110 = vsel %vm109, %v106, %v108
    %v111 = vsel %vm109, %v104, %v106
    %v112 = vsel %vm109, %v102, %v104
    %v113 = vsel %vm109, %v108, %v102
    %s114 = scalar_lea.vmem [#allocation5], 64
    %v115 = vld [vmem:[%s114] sm:$0xff]
    %v116 = vld [vmem:[%s114 + $0x8] sm:$0xff]
    %v117 = vld [vmem:[%s114 + $0x10] sm:$0xff]
    %v118 = vld [vmem:[%s114 + $0x18] sm:$0xff]
    %v119 = vmul.f32 %v113, %v115
    %v120 = vmul.f32 %v112, %v116
    %v121 = vmul.f32 %v111, %v117
    %v122 = vmul.f32 %v110, %v118
    %123 = vrot.lane.b32.xlu0 %v50, 1
    %v124 = vpop.permute.xlu0 %123
    %125 = vrot.lane.b32.xlu0 %v51, 1
    %v126 = vpop.permute.xlu0 %125
    %127 = vrot.lane.b32.xlu0 %v52, 1
    %v128 = vpop.permute.xlu0 %127
    %129 = vrot.lane.b32.xlu0 %v53, 1
    %v130 = vpop.permute.xlu0 %129
    %vm131 = vcmp.lt.s32.totalorder %v65, 1
    %v132 = vsel %vm131, %v128, %v130
    %v133 = vsel %vm131, %v126, %v128
    %v134 = vsel %vm131, %v124, %v126
    %v135 = vsel %vm131, %v130, %v124
    %s136 = scalar_lea.vmem [#allocation5], 96
    %v137 = vld [vmem:[%s136] sm:$0xff]
    %v138 = vld [vmem:[%s136 + $0x8] sm:$0xff]
    %v139 = vld [vmem:[%s136 + $0x10] sm:$0xff]
    %v140 = vld [vmem:[%s136 + $0x18] sm:$0xff]
    %v141 = vmul.f32 %v135, %v137
    %v142 = vmul.f32 %v134, %v138
    %v143 = vmul.f32 %v133, %v139
    %v144 = vmul.f32 %v132, %v140
    %s145 = scalar_lea.vmem [#allocation5], 128
    %v146 = vld [vmem:[%s145] sm:$0xff]
    %v147 = vld [vmem:[%s145 + $0x8] sm:$0xff]
    %v148 = vld [vmem:[%s145 + $0x10] sm:$0xff]
    %v149 = vld [vmem:[%s145 + $0x18] sm:$0xff]
    %v150 = vmul.f32 %v50, %v146
    %v151 = vmul.f32 %v51, %v147
    %v152 = vmul.f32 %v52, %v148
    %v153 = vmul.f32 %v53, %v149
    %154 = vrot.lane.b32.xlu0 %v50, 127
    %v155 = vpop.permute.xlu0 %154
    %156 = vrot.lane.b32.xlu0 %v51, 127
    %v157 = vpop.permute.xlu0 %156
    %158 = vrot.lane.b32.xlu0 %v52, 127
    %v159 = vpop.permute.xlu0 %158
    %160 = vrot.lane.b32.xlu0 %v53, 127
    %v161 = vpop.permute.xlu0 %160
    %vm162 = vcmp.lt.s32.totalorder %v65, 127
    %v163 = vsel %vm162, %v159, %v161
    %v164 = vsel %vm162, %v157, %v159
    %v165 = vsel %vm162, %v155, %v157
    %v166 = vsel %vm162, %v161, %v155
    %s167 = scalar_lea.vmem [#allocation5], 160
    %v168 = vld [vmem:[%s167] sm:$0xff]
    %v169 = vld [vmem:[%s167 + $0x8] sm:$0xff]
    %v170 = vld [vmem:[%s167 + $0x10] sm:$0xff]
    %v171 = vld [vmem:[%s167 + $0x18] sm:$0xff]
    %v172 = vmul.f32 %v165, %v168
    %v173 = vmul.f32 %v164, %v169
    %v174 = vmul.f32 %v163, %v170
    %v175 = vmul.f32 %v166, %v171
    %176 = vrot.lane.b32.xlu0 %v50, 113
    %v177 = vpop.permute.xlu0 %176
    %178 = vrot.lane.b32.xlu0 %v51, 113
    %v179 = vpop.permute.xlu0 %178
    %180 = vrot.lane.b32.xlu0 %v52, 113
    %v181 = vpop.permute.xlu0 %180
    %182 = vrot.lane.b32.xlu0 %v53, 113
    %v183 = vpop.permute.xlu0 %182
    %vm184 = vcmp.lt.s32.totalorder %v65, 113
    %v185 = vsel %vm184, %v181, %v183
    %v186 = vsel %vm184, %v179, %v181
    %v187 = vsel %vm184, %v177, %v179
    %v188 = vsel %vm184, %v183, %v177
    %s189 = scalar_lea.vmem [#allocation5], 192
    %v190 = vld [vmem:[%s189] sm:$0xff]
    %v191 = vld [vmem:[%s189 + $0x8] sm:$0xff]
    %v192 = vld [vmem:[%s189 + $0x10] sm:$0xff]
    %v193 = vld [vmem:[%s189 + $0x18] sm:$0xff]
    %v194 = vmul.f32 %v187, %v190
    %v195 = vmul.f32 %v186, %v191
    %v196 = vmul.f32 %v185, %v192
    %v197 = vmul.f32 %v188, %v193
    %198 = vrot.lane.b32.xlu0 %v50, 112
    %v199 = vpop.permute.xlu0 %198
    %200 = vrot.lane.b32.xlu0 %v51, 112
    %v201 = vpop.permute.xlu0 %200
    %202 = vrot.lane.b32.xlu0 %v52, 112
    %v203 = vpop.permute.xlu0 %202
    %204 = vrot.lane.b32.xlu0 %v53, 112
    %v205 = vpop.permute.xlu0 %204
    %vm206 = vcmp.lt.s32.totalorder %v65, 112
    %v207 = vsel %vm206, %v203, %v205
    %v208 = vsel %vm206, %v201, %v203
    %v209 = vsel %vm206, %v199, %v201
    %v210 = vsel %vm206, %v205, %v199
    %s211 = scalar_lea.vmem [#allocation5], 224
    %v212 = vld [vmem:[%s211] sm:$0xff]
    %v213 = vld [vmem:[%s211 + $0x8] sm:$0xff]
    %v214 = vld [vmem:[%s211 + $0x10] sm:$0xff]
    %v215 = vld [vmem:[%s211 + $0x18] sm:$0xff]
    %v216 = vmul.f32 %v209, %v212
    %v217 = vmul.f32 %v208, %v213
    %v218 = vmul.f32 %v207, %v214
    %v219 = vmul.f32 %v210, %v215
    %220 = vrot.lane.b32.xlu0 %v50, 111
    %v221 = vpop.permute.xlu0 %220
    %222 = vrot.lane.b32.xlu0 %v51, 111
    %v223 = vpop.permute.xlu0 %222
    %224 = vrot.lane.b32.xlu0 %v52, 111
    %v225 = vpop.permute.xlu0 %224
    %226 = vrot.lane.b32.xlu0 %v53, 111
    %v227 = vpop.permute.xlu0 %226
    %vm228 = vcmp.lt.s32.totalorder %v65, 111
    %v229 = vsel %vm228, %v225, %v227
    %v230 = vsel %vm228, %v223, %v225
    %v231 = vsel %vm228, %v221, %v223
    %v232 = vsel %vm228, %v227, %v221
    %s233 = scalar_lea.vmem [#allocation5], 256
    %v234 = vld [vmem:[%s233] sm:$0xff]
    %v235 = vld [vmem:[%s233 + $0x8] sm:$0xff]
    %v236 = vld [vmem:[%s233 + $0x10] sm:$0xff]
    %v237 = vld [vmem:[%s233 + $0x18] sm:$0xff]
    %v238 = vmul.f32 %v231, %v234
    %v239 = vmul.f32 %v230, %v235
    %v240 = vmul.f32 %v229, %v236
    %v241 = vmul.f32 %v232, %v237
    %243 = vset.pattern.permute.xlu0 0
    %244 = vperm.xlu0 %243, %v55
    %v245 = vpop.permute.xlu0 %244
    %vm247 = vcmask 588800
    %v249 = vsel %vm247, %v54, 0
    %251 = vmatprep.subr.mxu0 %v76
    %252 = vmatpush1.msra.mxu0 %v75
    %253 = vmatprep.subr.mxu0 %v98
    %254 = vmatpush1.msra.mxu0 %v97
    %255 = vmatprep.subr.mxu0 %v120
    %256 = vmatpush1.msra.mxu0 %v119
    %257 = vmatprep.subr.mxu0 %v142
    %258 = vmatpush1.msra.mxu0 %v141
    %259 = vmatprep.subr.mxu0 %v151
    %260 = vmatpush1.msra.mxu0 %v150
    %261 = vmatprep.subr.mxu0 %v173
    %262 = vmatpush1.msra.mxu0 %v172
    %263 = vmatprep.subr.mxu0 %v195
    %264 = vmatpush1.msra.mxu0 %v194
    %265 = vmatprep.subr.mxu0 %v217
    %266 = vmatpush1.msra.mxu0 %v216
    %267 = vmatprep.subr.mxu0 %v239
    %268 = vmatpush1.msra.mxu0 %v238
    %269 = vmatprep.subr.mxu0 0.0
    %270 = vmatpush1.msra.mxu0 0.0
    %271 = vmatprep.subr.mxu0 0.0
    %272 = vmatpush1.msra.mxu0 0.0
    %273 = vmatprep.subr.mxu0 0.0
    %274 = vmatpush1.msra.mxu0 0.0
    %275 = vmatprep.subr.mxu0 0.0
    %276 = vmatpush1.msra.mxu0 0.0
    %277 = vmatprep.subr.mxu0 0.0
    %278 = vmatpush1.msra.mxu0 0.0
    %279 = vmatprep.subr.mxu0 0.0
    %280 = vmatpush1.msra.mxu0 0.0
    %281 = vmatprep.subr.mxu0 0.0
    %282 = vmatpush1.msra.mxu0 0.0
    %283 = vmatprep.subr.mxu0 0.0
    %284 = vmatpush1.msra.mxu0 0.0
    %285 = vmatprep.subr.mxu0 0.0
    %286 = vmatpush1.msra.mxu0 0.0
    %287 = vmatprep.subr.mxu0 0.0
    %288 = vmatpush1.msra.mxu0 0.0
    %289 = vmatprep.subr.mxu0 0.0
    %290 = vmatpush1.msra.mxu0 0.0
    %291 = vmatprep.subr.mxu0 0.0
    %292 = vmatpush1.msra.mxu0 0.0
    %293 = vmatprep.subr.mxu0 0.0
    %294 = vmatpush1.msra.mxu0 0.0
    %295 = vmatprep.subr.mxu0 0.0
    %296 = vmatpush1.msra.mxu0 0.0
    %297 = vmatprep.subr.mxu0 0.0
    %298 = vmatpush1.msra.mxu0 0.0
    %299 = vmatprep.subr.mxu0 0.0
    %300 = vmatpush1.msra.mxu0 0.0
    %301 = vmatprep.subr.mxu0 0.0
    %302 = vmatpush1.msra.mxu0 0.0
    %303 = vmatprep.subr.mxu0 0.0
    %304 = vmatpush1.msra.mxu0 0.0
    %305 = vmatprep.subr.mxu0 0.0
    %306 = vmatpush1.msra.mxu0 0.0
    %307 = vmatprep.subr.mxu0 0.0
    %308 = vmatpush1.msra.mxu0 0.0
    %309 = vmatprep.subr.mxu0 0.0
    %310 = vmatpush1.msra.mxu0 0.0
    %311 = vmatprep.subr.mxu0 0.0
    %312 = vmatpush1.msra.mxu0 0.0
    %313 = vmatprep.subr.mxu0 0.0
    %314 = vmatpush1.msra.mxu0 0.0
    %315 = vmatprep.mubr.f32.mxu0 0.0
    %316 = vmatmul.mubr.f32.gmra.mrb[0].mxu0 %v249
    %v317 = vpop.f32.mrb[0].mxu0
    %v318 = vadd.f32 %v245, %v317
    %v319 = vpop.f32.mrb[0].mxu0
    %v320 = vadd.f32 %v245, %v319
    %321 = vdwg.mxu0
    %322 = vmatprep.subr.mxu0 %v78
    %323 = vmatpush1.msra.mxu0 %v77
    %324 = vmatprep.subr.mxu0 %v100
    %325 = vmatpush1.msra.mxu0 %v99
    %326 = vmatprep.subr.mxu0 %v122
    %327 = vmatpush1.msra.mxu0 %v121
    %328 = vmatprep.subr.mxu0 %v144
    %329 = vmatpush1.msra.mxu0 %v143
    %330 = vmatprep.subr.mxu0 %v153
    %331 = vmatpush1.msra.mxu0 %v152
    %332 = vmatprep.subr.mxu0 %v175
    %333 = vmatpush1.msra.mxu0 %v174
    %334 = vmatprep.subr.mxu0 %v197
    %335 = vmatpush1.msra.mxu0 %v196
    %336 = vmatprep.subr.mxu0 %v219
    %337 = vmatpush1.msra.mxu0 %v218
    %338 = vmatprep.subr.mxu0 %v241
    %339 = vmatpush1.msra.mxu0 %v240
    %340 = vmatprep.subr.mxu0 0.0
    %341 = vmatpush1.msra.mxu0 0.0
    %342 = vmatprep.subr.mxu0 0.0
    %343 = vmatpush1.msra.mxu0 0.0
    %344 = vmatprep.subr.mxu0 0.0
    %345 = vmatpush1.msra.mxu0 0.0
    %346 = vmatprep.subr.mxu0 0.0
    %347 = vmatpush1.msra.mxu0 0.0
    %348 = vmatprep.subr.mxu0 0.0
    %349 = vmatpush1.msra.mxu0 0.0
    %350 = vmatprep.subr.mxu0 0.0
    %351 = vmatpush1.msra.mxu0 0.0
    %352 = vmatprep.subr.mxu0 0.0
    %353 = vmatpush1.msra.mxu0 0.0
    %354 = vmatprep.subr.mxu0 0.0
    %355 = vmatpush1.msra.mxu0 0.0
    %356 = vmatprep.subr.mxu0 0.0
    %357 = vmatpush1.msra.mxu0 0.0
    %358 = vmatprep.subr.mxu0 0.0
    %359 = vmatpush1.msra.mxu0 0.0
    %360 = vmatprep.subr.mxu0 0.0
    %361 = vmatpush1.msra.mxu0 0.0
    %362 = vmatprep.subr.mxu0 0.0
    %363 = vmatpush1.msra.mxu0 0.0
    %364 = vmatprep.subr.mxu0 0.0
    %365 = vmatpush1.msra.mxu0 0.0
    %366 = vmatprep.subr.mxu0 0.0
    %367 = vmatpush1.msra.mxu0 0.0
    %368 = vmatprep.subr.mxu0 0.0
    %369 = vmatpush1.msra.mxu0 0.0
    %370 = vmatprep.subr.mxu0 0.0
    %371 = vmatpush1.msra.mxu0 0.0
    %372 = vmatprep.subr.mxu0 0.0
    %373 = vmatpush1.msra.mxu0 0.0
    %374 = vmatprep.subr.mxu0 0.0
    %375 = vmatpush1.msra.mxu0 0.0
    %376 = vmatprep.subr.mxu0 0.0
    %377 = vmatpush1.msra.mxu0 0.0
    %378 = vmatprep.subr.mxu0 0.0
    %379 = vmatpush1.msra.mxu0 0.0
    %380 = vmatprep.subr.mxu0 0.0
    %381 = vmatpush1.msra.mxu0 0.0
    %382 = vmatprep.subr.mxu0 0.0
    %383 = vmatpush1.msra.mxu0 0.0
    %384 = vmatprep.subr.mxu0 0.0
    %385 = vmatpush1.msra.mxu0 0.0
    %386 = vmatprep.mubr.f32.mxu0 0.0
    %387 = vmatmul.mubr.f32.gmra.mrb[0].mxu0 %v249
    %v388 = vpop.f32.mrb[0].mxu0
    %v389 = vadd.f32 %v245, %v388
    %v390 = vpop.f32.mrb[0].mxu0
    %v391 = vadd.f32 %v245, %v390
    %392 = vdwg.mxu0
    %v393 = vmax.f32 %v318, 0.0
    %v394 = vmax.f32 %v320, 0.0
    %v395 = vmax.f32 %v389, 0.0
    %v396 = vmax.f32 %v391, 0.0
    %v397 = vld [vmem:[%s3] sm:$0xff]
    %v398 = vld [vmem:[%s4] sm:$0xff]
    %399 = vrot.lane.b32.xlu0 %v393, 17
    %v400 = vpop.permute.xlu0 %399
    %401 = vrot.lane.b32.xlu0 %v394, 17
    %v402 = vpop.permute.xlu0 %401
    %403 = vrot.lane.b32.xlu0 %v395, 17
    %v404 = vpop.permute.xlu0 %403
    %405 = vrot.lane.b32.xlu0 %v396, 17
    %v406 = vpop.permute.xlu0 %405
    %v407 = vsel %vm66, %v404, %v406
    %v408 = vsel %vm66, %v402, %v404
    %v409 = vsel %vm66, %v400, %v402
    %v410 = vsel %vm66, %v406, %v400
    %v411 = vmul.f32 %v410, %v71
    %v412 = vmul.f32 %v409, %v72
    %v413 = vmul.f32 %v408, %v73
    %v414 = vmul.f32 %v407, %v74
    %415 = vrot.lane.b32.xlu0 %v393, 16
    %v416 = vpop.permute.xlu0 %415
    %417 = vrot.lane.b32.xlu0 %v394, 16
    %v418 = vpop.permute.xlu0 %417
    %419 = vrot.lane.b32.xlu0 %v395, 16
    %v420 = vpop.permute.xlu0 %419
    %421 = vrot.lane.b32.xlu0 %v396, 16
    %v422 = vpop.permute.xlu0 %421
    %v423 = vsel %vm87, %v420, %v422
    %v424 = vsel %vm87, %v418, %v420
    %v425 = vsel %vm87, %v416, %v418
    %v426 = vsel %vm87, %v422, %v416
    %v427 = vmul.f32 %v426, %v93
    %v428 = vmul.f32 %v425, %v94
    %v429 = vmul.f32 %v424, %v95
    %v430 = vmul.f32 %v423, %v96
    %431 = vrot.lane.b32.xlu0 %v393, 15
    %v432 = vpop.permute.xlu0 %431
    %433 = vrot.lane.b32.xlu0 %v394, 15
    %v434 = vpop.permute.xlu0 %433
    %435 = vrot.lane.b32.xlu0 %v395, 15
    %v436 = vpop.permute.xlu0 %435
    %437 = vrot.lane.b32.xlu0 %v396, 15
    %v438 = vpop.permute.xlu0 %437
    %v439 = vsel %vm109, %v436, %v438
    %v440 = vsel %vm109, %v434, %v436
    %v441 = vsel %vm109, %v432, %v434
    %v442 = vsel %vm109, %v438, %v432
    %v443 = vmul.f32 %v442, %v115
    %v444 = vmul.f32 %v441, %v116
    %v445 = vmul.f32 %v440, %v117
    %v446 = vmul.f32 %v439, %v118
    %447 = vrot.lane.b32.xlu0 %v393, 1
    %v448 = vpop.permute.xlu0 %447
    %449 = vrot.lane.b32.xlu0 %v394, 1
    %v450 = vpop.permute.xlu0 %449
    %451 = vrot.lane.b32.xlu0 %v395, 1
    %v452 = vpop.permute.xlu0 %451
    %453 = vrot.lane.b32.xlu0 %v396, 1
    %v454 = vpop.permute.xlu0 %453
    %v455 = vsel %vm131, %v452, %v454
    %v456 = vsel %vm131, %v450, %v452
    %v457 = vsel %vm131, %v448, %v450
    %v458 = vsel %vm131, %v454, %v448
    %v459 = vmul.f32 %v458, %v137
    %v460 = vmul.f32 %v457, %v138
    %v461 = vmul.f32 %v456, %v139
    %v462 = vmul.f32 %v455, %v140
    %v463 = vmul.f32 %v393, %v146
    %v464 = vmul.f32 %v394, %v147
    %v465 = vmul.f32 %v395, %v148
    %v466 = vmul.f32 %v396, %v149
    %467 = vrot.lane.b32.xlu0 %v393, 127
    %v468 = vpop.permute.xlu0 %467
    %469 = vrot.lane.b32.xlu0 %v394, 127
    %v470 = vpop.permute.xlu0 %469
    %471 = vrot.lane.b32.xlu0 %v395, 127
    %v472 = vpop.permute.xlu0 %471
    %473 = vrot.lane.b32.xlu0 %v396, 127
    %v474 = vpop.permute.xlu0 %473
    %v475 = vsel %vm162, %v472, %v474
    %v476 = vsel %vm162, %v470, %v472
    %v477 = vsel %vm162, %v468, %v470
    %v478 = vsel %vm162, %v474, %v468
    %v479 = vmul.f32 %v477, %v168
    %v480 = vmul.f32 %v476, %v169
    %v481 = vmul.f32 %v475, %v170
    %v482 = vmul.f32 %v478, %v171
    %483 = vrot.lane.b32.xlu0 %v393, 113
    %v484 = vpop.permute.xlu0 %483
    %485 = vrot.lane.b32.xlu0 %v394, 113
    %v486 = vpop.permute.xlu0 %485
    %487 = vrot.lane.b32.xlu0 %v395, 113
    %v488 = vpop.permute.xlu0 %487
    %489 = vrot.lane.b32.xlu0 %v396, 113
    %v490 = vpop.permute.xlu0 %489
    %v491 = vsel %vm184, %v488, %v490
    %v492 = vsel %vm184, %v486, %v488
    %v493 = vsel %vm184, %v484, %v486
    %v494 = vsel %vm184, %v490, %v484
    %v495 = vmul.f32 %v493, %v190
    %v496 = vmul.f32 %v492, %v191
    %v497 = vmul.f32 %v491, %v192
    %v498 = vmul.f32 %v494, %v193
    %499 = vrot.lane.b32.xlu0 %v393, 112
    %v500 = vpop.permute.xlu0 %499
    %501 = vrot.lane.b32.xlu0 %v394, 112
    %v502 = vpop.permute.xlu0 %501
    %503 = vrot.lane.b32.xlu0 %v395, 112
    %v504 = vpop.permute.xlu0 %503
    %505 = vrot.lane.b32.xlu0 %v396, 112
    %v506 = vpop.permute.xlu0 %505
    %v507 = vsel %vm206, %v504, %v506
    %v508 = vsel %vm206, %v502, %v504
    %v509 = vsel %vm206, %v500, %v502
    %v510 = vsel %vm206, %v506, %v500
    %v511 = vmul.f32 %v509, %v212
    %v512 = vmul.f32 %v508, %v213
    %v513 = vmul.f32 %v507, %v214
    %v514 = vmul.f32 %v510, %v215
    %515 = vrot.lane.b32.xlu0 %v393, 111
    %v516 = vpop.permute.xlu0 %515
    %517 = vrot.lane.b32.xlu0 %v394, 111
    %v518 = vpop.permute.xlu0 %517
    %519 = vrot.lane.b32.xlu0 %v395, 111
    %v520 = vpop.permute.xlu0 %519
    %521 = vrot.lane.b32.xlu0 %v396, 111
    %v522 = vpop.permute.xlu0 %521
    %v523 = vsel %vm228, %v520, %v522
    %v524 = vsel %vm228, %v518, %v520
    %v525 = vsel %vm228, %v516, %v518
    %v526 = vsel %vm228, %v522, %v516
    %v527 = vmul.f32 %v525, %v234
    %v528 = vmul.f32 %v524, %v235
    %v529 = vmul.f32 %v523, %v236
    %v530 = vmul.f32 %v526, %v237
    %532 = vset.pattern.permute.xlu0 0
    %533 = vperm.xlu0 %532, %v398
    %v534 = vpop.permute.xlu0 %533
    %v537 = vsel %vm247, %v397, 0
    %539 = vmatprep.subr.mxu0 %v412
    %540 = vmatpush1.msra.mxu0 %v411
    %541 = vmatprep.subr.mxu0 %v428
    %542 = vmatpush1.msra.mxu0 %v427
    %543 = vmatprep.subr.mxu0 %v444
    %544 = vmatpush1.msra.mxu0 %v443
    %545 = vmatprep.subr.mxu0 %v460
    %546 = vmatpush1.msra.mxu0 %v459
    %547 = vmatprep.subr.mxu0 %v464
    %548 = vmatpush1.msra.mxu0 %v463
    %549 = vmatprep.subr.mxu0 %v480
    %550 = vmatpush1.msra.mxu0 %v479
    %551 = vmatprep.subr.mxu0 %v496
    %552 = vmatpush1.msra.mxu0 %v495
    %553 = vmatprep.subr.mxu0 %v512
    %554 = vmatpush1.msra.mxu0 %v511
    %555 = vmatprep.subr.mxu0 %v528
    %556 = vmatpush1.msra.mxu0 %v527
    %557 = vmatprep.subr.mxu0 0.0
    %558 = vmatpush1.msra.mxu0 0.0
    %559 = vmatprep.subr.mxu0 0.0
    %560 = vmatpush1.msra.mxu0 0.0
    %561 = vmatprep.subr.mxu0 0.0
    %562 = vmatpush1.msra.mxu0 0.0
    %563 = vmatprep.subr.mxu0 0.0
    %564 = vmatpush1.msra.mxu0 0.0
    %565 = vmatprep.subr.mxu0 0.0
    %566 = vmatpush1.msra.mxu0 0.0
    %567 = vmatprep.subr.mxu0 0.0
    %568 = vmatpush1.msra.mxu0 0.0
    %569 = vmatprep.subr.mxu0 0.0
    %570 = vmatpush1.msra.mxu0 0.0
    %571 = vmatprep.subr.mxu0 0.0
    %572 = vmatpush1.msra.mxu0 0.0
    %573 = vmatprep.subr.mxu0 0.0
    %574 = vmatpush1.msra.mxu0 0.0
    %575 = vmatprep.subr.mxu0 0.0
    %576 = vmatpush1.msra.mxu0 0.0
    %577 = vmatprep.subr.mxu0 0.0
    %578 = vmatpush1.msra.mxu0 0.0
    %579 = vmatprep.subr.mxu0 0.0
    %580 = vmatpush1.msra.mxu0 0.0
    %581 = vmatprep.subr.mxu0 0.0
    %582 = vmatpush1.msra.mxu0 0.0
    %583 = vmatprep.subr.mxu0 0.0
    %584 = vmatpush1.msra.mxu0 0.0
    %585 = vmatprep.subr.mxu0 0.0
    %586 = vmatpush1.msra.mxu0 0.0
    %587 = vmatprep.subr.mxu0 0.0
    %588 = vmatpush1.msra.mxu0 0.0
    %589 = vmatprep.subr.mxu0 0.0
    %590 = vmatpush1.msra.mxu0 0.0
    %591 = vmatprep.subr.mxu0 0.0
    %592 = vmatpush1.msra.mxu0 0.0
    %593 = vmatprep.subr.mxu0 0.0
    %594 = vmatpush1.msra.mxu0 0.0
    %595 = vmatprep.subr.mxu0 0.0
    %596 = vmatpush1.msra.mxu0 0.0
    %597 = vmatprep.subr.mxu0 0.0
    %598 = vmatpush1.msra.mxu0 0.0
    %599 = vmatprep.subr.mxu0 0.0
    %600 = vmatpush1.msra.mxu0 0.0
    %601 = vmatprep.subr.mxu0 0.0
    %602 = vmatpush1.msra.mxu0 0.0
    %603 = vmatprep.mubr.f32.mxu0 0.0
    %604 = vmatmul.mubr.f32.gmra.mrb[0].mxu0 %v537
    %v605 = vpop.f32.mrb[0].mxu0
    %v606 = vadd.f32 %v534, %v605
    %v607 = vpop.f32.mrb[0].mxu0
    %v608 = vadd.f32 %v534, %v607
    %609 = vdwg.mxu0
    %610 = vmatprep.subr.mxu0 %v414
    %611 = vmatpush1.msra.mxu0 %v413
    %612 = vmatprep.subr.mxu0 %v430
    %613 = vmatpush1.msra.mxu0 %v429
    %614 = vmatprep.subr.mxu0 %v446
    %615 = vmatpush1.msra.mxu0 %v445
    %616 = vmatprep.subr.mxu0 %v462
    %617 = vmatpush1.msra.mxu0 %v461
    %618 = vmatprep.subr.mxu0 %v466
    %619 = vmatpush1.msra.mxu0 %v465
    %620 = vmatprep.subr.mxu0 %v482
    %621 = vmatpush1.msra.mxu0 %v481
    %622 = vmatprep.subr.mxu0 %v498
    %623 = vmatpush1.msra.mxu0 %v497
    %624 = vmatprep.subr.mxu0 %v514
    %625 = vmatpush1.msra.mxu0 %v513
    %626 = vmatprep.subr.mxu0 %v530
    %627 = vmatpush1.msra.mxu0 %v529
    %628 = vmatprep.subr.mxu0 0.0
    %629 = vmatpush1.msra.mxu0 0.0
    %630 = vmatprep.subr.mxu0 0.0
    %631 = vmatpush1.msra.mxu0 0.0
    %632 = vmatprep.subr.mxu0 0.0
    %633 = vmatpush1.msra.mxu0 0.0
    %634 = vmatprep.subr.mxu0 0.0
    %635 = vmatpush1.msra.mxu0 0.0
    %636 = vmatprep.subr.mxu0 0.0
    %637 = vmatpush1.msra.mxu0 0.0
    %638 = vmatprep.subr.mxu0 0.0
    %639 = vmatpush1.msra.mxu0 0.0
    %640 = vmatprep.subr.mxu0 0.0
    %641 = vmatpush1.msra.mxu0 0.0
    %642 = vmatprep.subr.mxu0 0.0
    %643 = vmatpush1.msra.mxu0 0.0
    %644 = vmatprep.subr.mxu0 0.0
    %645 = vmatpush1.msra.mxu0 0.0
    %646 = vmatprep.subr.mxu0 0.0
    %647 = vmatpush1.msra.mxu0 0.0
    %648 = vmatprep.subr.mxu0 0.0
    %649 = vmatpush1.msra.mxu0 0.0
    %650 = vmatprep.subr.mxu0 0.0
    %651 = vmatpush1.msra.mxu0 0.0
    %652 = vmatprep.subr.mxu0 0.0
    %653 = vmatpush1.msra.mxu0 0.0
    %654 = vmatprep.subr.mxu0 0.0
    %655 = vmatpush1.msra.mxu0 0.0
    %656 = vmatprep.subr.mxu0 0.0
    %657 = vmatpush1.msra.mxu0 0.0
    %658 = vmatprep.subr.mxu0 0.0
    %659 = vmatpush1.msra.mxu0 0.0
    %660 = vmatprep.subr.mxu0 0.0
    %661 = vmatpush1.msra.mxu0 0.0
    %662 = vmatprep.subr.mxu0 0.0
    %663 = vmatpush1.msra.mxu0 0.0
    %664 = vmatprep.subr.mxu0 0.0
    %665 = vmatpush1.msra.mxu0 0.0
    %666 = vmatprep.subr.mxu0 0.0
    %667 = vmatpush1.msra.mxu0 0.0
    %668 = vmatprep.subr.mxu0 0.0
    %669 = vmatpush1.msra.mxu0 0.0
    %670 = vmatprep.subr.mxu0 0.0
    %671 = vmatpush1.msra.mxu0 0.0
    %672 = vmatprep.subr.mxu0 0.0
    %673 = vmatpush1.msra.mxu0 0.0
    %674 = vmatprep.mubr.f32.mxu0 0.0
    %675 = vmatmul.mubr.f32.gmra.mrb[0].mxu0 %v537
    %v676 = vpop.f32.mrb[0].mxu0
    %v677 = vadd.f32 %v534, %v676
    %v678 = vpop.f32.mrb[0].mxu0
    %v679 = vadd.f32 %v534, %v678
    %680 = vdwg.mxu0
    %v681 = vadd.f32 %v606, %v50
    %v682 = vadd.f32 %v608, %v51
    %v683 = vadd.f32 %v677, %v52
    %v684 = vadd.f32 %v679, %v53
    %v685 = vmax.f32 %v681, 0.0
    %v686 = vmax.f32 %v682, 0.0
    %v687 = vmax.f32 %v683, 0.0
    %v688 = vmax.f32 %v684, 0.0
    %689 = vst [vmem:[#allocation7] sm:$0xff] %v685
    %690 = vst [vmem:[#allocation7 + $0x8] sm:$0xff] %v686
    %691 = vst [vmem:[#allocation7 + $0x10] sm:$0xff] %v687
    %692 = vst [vmem:[#allocation7 + $0x18] sm:$0xff] %v688
    // Predicated region
    $region34: #{tpu_custom_call.1} parent=1 // pred_check
      _
    $region35: #{tpu_custom_call.1} parent=1 // pred_check_branch
      %694 = sbr.rel (0) target = $region37
    $region36: #{tpu_custom_call.1} parent=1 // pred_region
      %s696 = ssub.s32 512, 512
      %697 = vsyncadd [#allocation4], %s696
      %s699 = sshll.u32 [#allocation7], 4
      %s700 = int_to_ptr.vmem [resolvable:$true] %s699
      %702 = dma.vmem_to_hbm [thread:$0]  %s700, 512, %s6, [#allocation4]
    $region37: #{tpu_custom_call.1} parent=1 // pred_fallthru
      _
    // Predicated region
    $region38: #{tpu_custom_call.1} parent=1 // pred_check
      _
    $region39: #{tpu_custom_call.1} parent=1 // pred_check_branch
      %704 = sbr.rel (0) target = $region41
    $region40: #{tpu_custom_call.1} parent=1 // pred_region
      %705 = dma.done [#allocation4], 512
    $region41: #{tpu_custom_call.1} parent=1 // pred_fallthru
      _
    %706 = vsyncpa [#allocation3], 1
    %707 = vsyncpa [#allocation6], 1
    %708 = vsyncpa [#allocation4], 1

</llo_original>
